<compile_context>
chip_gen: v5e
topology: v5e:2x2
jax: 0.10.0
libtpu: 0.0.40
codegen_flags: <defaults>
</compile_context>

<pallas_src>
from functools import partial

import jax
import jax.numpy as jnp
from jax.experimental import pallas as pl
from jax.experimental.pallas import tpu as pltpu


def _fold_lane_groups(t, d):
    """Sum adjacent lane groups of width d: (R, G*d) -> (R, d).

    Pairwise halving while the group count is even (first split is vreg-aligned, later
    splits are short lane shifts on the XLU); sequential sweep for an odd remainder.
    """
    w = t.shape[-1]
    while w > d and (w // d) % 2 == 0:
        w //= 2
        t = t[:, :w] + t[:, w:]
    if w > d:
        acc = t[:, :d]
        for g in range(1, w // d):
            acc = acc + t[:, g * d:(g + 1) * d]
        t = acc
    return t


def _user_encoder_kernel(x_ref, w_ref, b_ref, qx_ref, out_ref, *, dim):
    # x_ref:   (BT, N*D)   lane-dense batch tile of clicked news vectors
    # w_ref:   (N*D, N*Q)  block-diagonal Linear weight      (resident)
    # b_ref:   (1, N*Q)    Linear bias tiled per news slot   (resident)
    # qx_ref:  (N*Q, N*D)  query expanded over the D lanes   (resident)
    # out_ref: (BT//PACK, PACK*D)  lane-dense packed user vectors
    x = x_ref[...].astype(jnp.float32)                                   # (BT, N*D)

    # Linear(D->Q) + tanh for all N news positions in one lane-dense MXU matmul.
    h = jnp.tanh(
        jnp.dot(x, w_ref[...], preferred_element_type=jnp.float32) + b_ref[...]
    )                                                                    # (BT, N*Q)

    # Attention logits, broadcast over the D lanes of each news item:
    #   s[:, n*D + d] = sum_q h[:, n*Q + q] * query[q]   for every d.
    s = jnp.dot(h, qx_ref[...], preferred_element_type=jnp.float32)      # (BT, N*D)

    # Row-local softmax pieces (duplicated lanes do not change the per-row max).
    m = jnp.max(s, axis=-1, keepdims=True)                               # (BT, 1)
    p = jnp.exp(s - m)                                                   # (BT, N*D)
    denom = jnp.sum(p, axis=-1, keepdims=True)                           # (BT, 1) == D * sum_n exp

    # Weighted sum over news items: full-lane VPU multiply + lane-group fold
    # (no (BT, N, D) broadcast temporary, no relayout of the attention weights).
    num = _fold_lane_groups(p * x, dim)                                  # (BT, D) = sum_n exp * x_n

    user = num * (float(dim) * pl.reciprocal(denom, approx=False))       # (BT, D)

    # Lane-dense store: PACK user vectors per 128-lane output row.
    out_ref[...] = user.reshape(out_ref.shape).astype(out_ref.dtype)


def user_encoder(clicked_news_vector, W, b, q, *,
                 block_b=2048, vmem_limit_bytes=48 * 1024 * 1024):
    """clicked_news_vector: [B, N, D] -> user_vector: [B, D]"""
    B, N, D = clicked_news_vector.shape
    Q = W.shape[1]
    ND, NQ = N * D, N * Q

    # Lane-dense view of the input (free: row-major contiguous reshape, no HBM copy).
    x2d = clicked_news_vector.reshape(B, ND)

    # Small resident operands (host precompute, a few hundred KiB):
    #   block-diagonal Linear weight, tiled bias, and the query expanded so each score
    #   lands on all D lanes of its news item.
    W_bd = jnp.kron(jnp.eye(N, dtype=W.dtype), W)                                     # (N*D, N*Q)
    b_tile = jnp.tile(b.reshape(1, Q), (1, N))                                        # (1, N*Q)
    q_exp = jnp.kron(jnp.eye(N, dtype=q.dtype),
                     jnp.broadcast_to(q.reshape(Q, 1), (Q, D)))                       # (N*Q, N*D)

    # Pack PACK user vectors per output row so the final store is 128-lane dense.
    PACK = 128 // D if (0 < D < 128 and 128 % D == 0) else 1

    if B <= block_b:
        # Single grid step covering the whole batch: full-dim blocks, no padding, no ragged edge.
        if B % PACK != 0:
            PACK = 1
        BT = B
    else:
        # Multi-step pipeline: aim for >= ~4 grid steps, tile aligned to (8 * PACK) rows so the
        # packed output block keeps clean (8, 128) tiling.  A ragged final block (B not a
        # multiple of BT) is masked by the Pallas pipeline -- no full-array jnp.pad copy.
        align = 8 * PACK
        BT = min(block_b, max(align, pl.cdiv(B, 4)))
        BT = pl.cdiv(BT, align) * align

    grid = (pl.cdiv(B, BT),)
    R = pl.cdiv(B, PACK)  # packed output rows

    out_packed = pl.pallas_call(
        partial(_user_encoder_kernel, dim=D),
        out_shape=jax.ShapeDtypeStruct((R, PACK * D), clicked_news_vector.dtype),
        grid=grid,
        in_specs=[
            pl.BlockSpec((BT, ND), lambda i: (i, 0)),      # per-step batch slab (lane dense)
            pl.BlockSpec((ND, NQ), lambda i: (0, 0)),      # block-diag weight   (resident)
            pl.BlockSpec((1, NQ), lambda i: (0, 0)),       # tiled bias          (resident)
            pl.BlockSpec((NQ, ND), lambda i: (0, 0)),      # expanded query      (resident)
        ],
        out_specs=pl.BlockSpec((BT // PACK, PACK * D), lambda i: (i, 0)),
        compiler_params=pltpu.CompilerParams(
            # batch tiles are independent -> shard across v7x's 2 TensorCores
            dimension_semantics=("parallel",),
            # above the 16 MiB (v5e) / 32 MiB (v6e, v7x) scoped defaults so BT up to ~4096
            # double-buffers comfortably; still well under every generation's physical VMEM.
            vmem_limit_bytes=vmem_limit_bytes,
        ),
    )(x2d, W_bd, b_tile, q_exp)

    return out_packed.reshape(R * PACK, D)[:B]


def reference(clicked, W, b, q):
    h = jnp.tanh(jnp.einsum("bnd,dq->bnq", clicked, W) + b)
    scores = jnp.einsum("bnq,q->bn", h, q)
    attn = jax.nn.softmax(scores, axis=1)
    return jnp.einsum("bn,bnd->bd", attn, clicked)


if __name__ == "__main__":
    # config: num_clicked_news=8, word_embedding_dim=32, query_vector_dim=16
    B, N, D, Q = 2, 8, 32, 16

    key = jax.random.PRNGKey(0)
    k_x, k_w, k_b, k_q = jax.random.split(key, 4)

    clicked_news_vector = jax.random.normal(k_x, (B, N, D), dtype=jnp.float32)

    # Deterministic parameter init (Linear(D, Q) + attention query vector in [-0.1, 0.1])
    W = jax.random.uniform(k_w, (D, Q), dtype=jnp.float32, minval=-0.1, maxval=0.1)
    b = jax.random.uniform(k_b, (Q,), dtype=jnp.float32, minval=-0.1, maxval=0.1)
    q = jax.random.uniform(k_q, (Q,), dtype=jnp.float32, minval=-0.1, maxval=0.1)

    user_vec = user_encoder(clicked_news_vector, W, b, q)
    jax.block_until_ready(user_vec)

    ref = reference(clicked_news_vector, W, b, q)
    assert user_vec.shape == (B, D)
    assert jnp.allclose(user_vec, ref, atol=1e-5, rtol=1e-5)

    # Exercise the multi-step pipeline and the masked ragged final block (no padding copy).
    B2 = 100
    clicked2 = jax.random.normal(jax.random.PRNGKey(1), (B2, N, D), dtype=jnp.float32)
    user_vec2 = user_encoder(clicked2, W, b, q, block_b=32)
    jax.block_until_ready(user_vec2)
    ref2 = reference(clicked2, W, b, q)
    assert user_vec2.shape == (B2, D)
    assert jnp.allclose(user_vec2, ref2, atol=1e-5, rtol=1e-5)

    print("KERNEL_OK")
</pallas_src>

<mosaic_0001>
module attributes {stable_mosaic.version = 11 : i64} {
  func.func @_user_encoder_kernel(%arg0: i32, %arg1: memref<2x256xf32, #tpu.memory_space<vmem>>, %arg2: memref<256x128xf32, #tpu.memory_space<vmem>>, %arg3: memref<1x128xf32, #tpu.memory_space<vmem>>, %arg4: memref<128x256xf32, #tpu.memory_space<vmem>>, %arg5: memref<2x32xf32, #tpu.memory_space<vmem>>) attributes {dimension_semantics = [#tpu.dimension_semantics<parallel>], iteration_bounds = array<i64: 1>, scalar_prefetch = 0 : i64, scratch_operands = 0 : i64, tpu.core_type = #tpu.core_type<tc>, window_params = [{transform_indices = @transform_0, window_bounds = array<i64: 2, 256>}, {pipeline_mode = #tpu.pipeline_mode<synchronous>, transform_indices = @transform_1, window_bounds = array<i64: 256, 128>}, {pipeline_mode = #tpu.pipeline_mode<synchronous>, transform_indices = @transform_2, window_bounds = array<i64: 1, 128>}, {pipeline_mode = #tpu.pipeline_mode<synchronous>, transform_indices = @transform_3, window_bounds = array<i64: 128, 256>}, {transform_indices = @transform_4, window_bounds = array<i64: 2, 32>}]} {
    %c0 = arith.constant 0 : index
    %c0_0 = arith.constant 0 : index
    %0 = vector.load %arg1[%c0, %c0_0] : memref<2x256xf32, #tpu.memory_space<vmem>>, vector<2x256xf32>
    %c0_1 = arith.constant 0 : index
    %c0_2 = arith.constant 0 : index
    %1 = vector.load %arg2[%c0_1, %c0_2] : memref<256x128xf32, #tpu.memory_space<vmem>>, vector<256x128xf32>
    %cst = arith.constant dense<0.000000e+00> : vector<2x128xf32>
    %2 = tpu.matmul %0, %1, %cst {dimension_numbers = #tpu.dot_dimension_numbers<[1], [0], [0], [1], [0, 0, 1, 1], [], []>} : vector<2x256xf32>, vector<256x128xf32>, vector<2x128xf32> -> vector<2x128xf32>
    %c0_3 = arith.constant 0 : index
    %c0_4 = arith.constant 0 : index
    %3 = vector.load %arg3[%c0_3, %c0_4] : memref<1x128xf32, #tpu.memory_space<vmem>>, vector<1x128xf32>
    %4 = vector.broadcast %3 : vector<1x128xf32> to vector<2x128xf32>
    %5 = arith.addf %2, %4 : vector<2x128xf32>
    %6 = math.tanh %5 : vector<2x128xf32>
    %c0_5 = arith.constant 0 : index
    %c0_6 = arith.constant 0 : index
    %7 = vector.load %arg4[%c0_5, %c0_6] : memref<128x256xf32, #tpu.memory_space<vmem>>, vector<128x256xf32>
    %cst_7 = arith.constant dense<0.000000e+00> : vector<2x256xf32>
    %8 = tpu.matmul %6, %7, %cst_7 {dimension_numbers = #tpu.dot_dimension_numbers<[1], [0], [0], [1], [0, 0, 1, 1], [], []>} : vector<2x128xf32>, vector<128x256xf32>, vector<2x256xf32> -> vector<2x256xf32>
    %cst_8 = arith.constant dense<0xFF800000> : vector<2xf32>
    %9 = vector.multi_reduction <maximumf>, %8, %cst_8 [1] : vector<2x256xf32> to vector<2xf32>
    %10 = vector.shape_cast %9 : vector<2xf32> to vector<2x1xf32>
    %11 = vector.broadcast %10 : vector<2x1xf32> to vector<2x256xf32>
    %12 = arith.subf %8, %11 : vector<2x256xf32>
    %13 = math.exp %12 : vector<2x256xf32>
    %cst_9 = arith.constant dense<0.000000e+00> : vector<2xf32>
    %14 = vector.multi_reduction <add>, %13, %cst_9 [1] : vector<2x256xf32> to vector<2xf32>
    %15 = vector.shape_cast %14 : vector<2xf32> to vector<2x1xf32>
    %16 = arith.mulf %13, %0 : vector<2x256xf32>
    %17 = vector.extract_strided_slice %16 {offsets = [0, 0], sizes = [2, 128], strides = [1, 1]} : vector<2x256xf32> to vector<2x128xf32>
    %18 = vector.extract_strided_slice %16 {offsets = [0, 128], sizes = [2, 128], strides = [1, 1]} : vector<2x256xf32> to vector<2x128xf32>
    %19 = arith.addf %17, %18 : vector<2x128xf32>
    %20 = vector.extract_strided_slice %19 {offsets = [0, 0], sizes = [2, 64], strides = [1, 1]} : vector<2x128xf32> to vector<2x64xf32>
    %21 = vector.extract_strided_slice %19 {offsets = [0, 64], sizes = [2, 64], strides = [1, 1]} : vector<2x128xf32> to vector<2x64xf32>
    %22 = arith.addf %20, %21 : vector<2x64xf32>
    %23 = vector.extract_strided_slice %22 {offsets = [0, 0], sizes = [2, 32], strides = [1, 1]} : vector<2x64xf32> to vector<2x32xf32>
    %24 = vector.extract_strided_slice %22 {offsets = [0, 32], sizes = [2, 32], strides = [1, 1]} : vector<2x64xf32> to vector<2x32xf32>
    %25 = arith.addf %23, %24 : vector<2x32xf32>
    %26 = tpu.reciprocal %15 : vector<2x1xf32> -> vector<2x1xf32>
    %cst_10 = arith.constant 3.200000e+01 : f32
    %27 = vector.broadcast %cst_10 : f32 to vector<2x1xf32>
    %28 = arith.mulf %27, %26 : vector<2x1xf32>
    %29 = vector.broadcast %28 : vector<2x1xf32> to vector<2x32xf32>
    %30 = arith.mulf %25, %29 : vector<2x32xf32>
    %c0_11 = arith.constant 0 : index
    %c0_12 = arith.constant 0 : index
    %31 = vector.load %arg5[%c0_11, %c0_12] : memref<2x32xf32, #tpu.memory_space<vmem>>, vector<2x32xf32>
    tpu.vector_store %arg5[%c0_11, %c0_12], %30 {strides = array<i32>} : memref<2x32xf32, #tpu.memory_space<vmem>>, vector<2x32xf32>,
    return
  }
  func.func @transform_0(%arg0: i32) -> (i32, i32) {
    %c0_i32 = arith.constant 0 : i32
    %c0_i32_0 = arith.constant 0 : i32
    return %arg0, %c0_i32 : i32, i32
  }
  func.func @transform_1(%arg0: i32) -> (i32, i32) {
    %c0_i32 = arith.constant 0 : i32
    %c0_i32_0 = arith.constant 0 : i32
    %c0_i32_1 = arith.constant 0 : i32
    return %c0_i32, %c0_i32_0 : i32, i32
  }
  func.func @transform_2(%arg0: i32) -> (i32, i32) {
    %c0_i32 = arith.constant 0 : i32
    %c0_i32_0 = arith.constant 0 : i32
    %c0_i32_1 = arith.constant 0 : i32
    return %c0_i32, %c0_i32_0 : i32, i32
  }
  func.func @transform_3(%arg0: i32) -> (i32, i32) {
    %c0_i32 = arith.constant 0 : i32
    %c0_i32_0 = arith.constant 0 : i32
    %c0_i32_1 = arith.constant 0 : i32
    return %c0_i32, %c0_i32_0 : i32, i32
  }
  func.func @transform_4(%arg0: i32) -> (i32, i32) {
    %c0_i32 = arith.constant 0 : i32
    %c0_i32_0 = arith.constant 0 : i32
    return %arg0, %c0_i32 : i32, i32
  }
}

</mosaic_0001>

<llo_original>
// kernel: tpu_custom_call.1
$region0: #{tpu_custom_call.1}
  #allocation0 [shape = 'u32[]', space=smem, size = 0x4, offset = 0x4, fixed_abs, tag = 'smem constant byte address 0x4 - core index']
  #allocation1 [shape = 'u32[72,128]{1,0:T(1,128)}', space=vmem, size = 0x9000, scoped, tag = 'internal scratch']
  %s0 = inlined_call_operand.hbm [shape: f32[2,256], index: 0, kind: input, shape index: {}]
  %s1 = inlined_call_operand.hbm [shape: f32[256,128], index: 1, kind: input, shape index: {}]
  %s2 = inlined_call_operand.vmem [shape: f32[1,128], index: 2, kind: input, shape index: {}]
  %s3 = inlined_call_operand.hbm [shape: f32[128,256], index: 3, kind: input, shape index: {}]
  %s4 = inlined_call_operand.hbm [shape: f32[2,32], index: 4, kind: output, shape index: {}]
  %s5 = sld [smem:[#allocation0]]
  $region38: #{tpu_custom_call.1} parent=0
    _
  %s7 = ssub.s32 1, %s5
  %s8 = scalar_select 0, %s7, %s5
  $region1: #{tpu_custom_call.1} parent=0
    #allocation2 [shape = 'u8[2048]{0}', space=vmem, size = 0x800, scoped, tag = 'input window, operand 0, single buffered']
    #allocation3 [shape = 's32[1]{0}', space=sflag, size = 0x4, scoped, tag = 'scoped memory for tpu_custom_call.1']
    #allocation4 [shape = 's32[1]{0}', space=sflag, size = 0x4, scoped, tag = 'scoped memory for tpu_custom_call.1']
    #allocation5 [shape = 'u8[131072]{0}', space=vmem, size = 0x20000, scoped, tag = 'input window, operand 1, single buffered']
    #allocation6 [shape = 's32[1]{0}', space=sflag, size = 0x4, scoped, tag = 'scoped memory for tpu_custom_call.1']
    #allocation7 [shape = 'u8[131072]{0}', space=vmem, size = 0x20000, scoped, tag = 'input window, operand 3, single buffered']
    #allocation8 [shape = 'u8[1024]{0}', space=vmem, size = 0x400, scoped, tag = 'output window, operand 0, single buffered']
    %9 = vsyncpa [#allocation3], 0
    %10 = vsyncpa [#allocation6], 0
    %11 = vsyncpa [#allocation4], 0
    // Predicated region
    $region2: #{tpu_custom_call.1} parent=1 // pred_check
      _
    $region3: #{tpu_custom_call.1} parent=1 // pred_check_branch
      %13 = sbr.rel (0) target = $region5
    $region4: #{tpu_custom_call.1} parent=1 // pred_region
      %15 = vsyncadd [#allocation3], 0
      %s17 = sshll.u32 %s0, 4
      %s18 = int_to_ptr.hbm [resolvable:$true] %s17
      %s19 = sshll.u32 [#allocation2], 4
      %s20 = int_to_ptr.vmem [resolvable:$true] %s19
      %22 = dma.hbm_to_vmem [thread:$0]  %s18, 64, %s20, [#allocation3]
    $region5: #{tpu_custom_call.1} parent=1 // pred_fallthru
      _
    // Predicated region
    $region6: #{tpu_custom_call.1} parent=1 // pred_check
      _
    $region7: #{tpu_custom_call.1} parent=1 // pred_check_branch
      %24 = sbr.rel (0) target = $region9
    $region8: #{tpu_custom_call.1} parent=1 // pred_region
      %26 = vsyncadd [#allocation6], 0
      %s27 = sshll.u32 %s1, 4
      %s28 = int_to_ptr.hbm [resolvable:$true] %s27
      %s29 = sshll.u32 [#allocation5], 4
      %s30 = int_to_ptr.vmem [resolvable:$true] %s29
      %35 = dma.hbm_to_vmem [thread:$0]  %s28, 4096, %s30, [#allocation6], 128, 128, 8
    $region9: #{tpu_custom_call.1} parent=1 // pred_fallthru
      _
    // Predicated region
    $region10: #{tpu_custom_call.1} parent=1 // pred_check
      _
    $region11: #{tpu_custom_call.1} parent=1 // pred_check_branch
      %37 = sbr.rel (0) target = $region13
    $region12: #{tpu_custom_call.1} parent=1 // pred_region
      _
    $region13: #{tpu_custom_call.1} parent=1 // pred_fallthru
      _
    // Predicated region
    $region14: #{tpu_custom_call.1} parent=1 // pred_check
      _
    $region15: #{tpu_custom_call.1} parent=1 // pred_check_branch
      %39 = sbr.rel (0) target = $region17
    $region16: #{tpu_custom_call.1} parent=1 // pred_region
      %41 = vsyncadd [#allocation6], 0
      %s42 = sshll.u32 %s3, 4
      %s43 = int_to_ptr.hbm [resolvable:$true] %s42
      %s44 = sshll.u32 [#allocation7], 4
      %s45 = int_to_ptr.vmem [resolvable:$true] %s44
      %50 = dma.hbm_to_vmem [thread:$0]  %s43, 4096, %s45, [#allocation6], 256, 256, 16
    $region17: #{tpu_custom_call.1} parent=1 // pred_fallthru
      _
    // Predicated region
    $region18: #{tpu_custom_call.1} parent=1 // pred_check
      _
    $region19: #{tpu_custom_call.1} parent=1 // pred_check_branch
      %52 = sbr.rel (0) target = $region21
    $region20: #{tpu_custom_call.1} parent=1 // pred_region
      %54 = dma.done [#allocation3], 64
    $region21: #{tpu_custom_call.1} parent=1 // pred_fallthru
      _
    // Predicated region
    $region22: #{tpu_custom_call.1} parent=1 // pred_check
      _
    $region23: #{tpu_custom_call.1} parent=1 // pred_check_branch
      %56 = sbr.rel (0) target = $region25
    $region24: #{tpu_custom_call.1} parent=1 // pred_region
      %58 = dma.done [#allocation6], 4096
    $region25: #{tpu_custom_call.1} parent=1 // pred_fallthru
      _
    // Predicated region
    $region26: #{tpu_custom_call.1} parent=1 // pred_check
      _
    $region27: #{tpu_custom_call.1} parent=1 // pred_check_branch
      %60 = sbr.rel (0) target = $region29
    $region28: #{tpu_custom_call.1} parent=1 // pred_region
      %62 = dma.done [#allocation6], 4096
    $region29: #{tpu_custom_call.1} parent=1 // pred_fallthru
      _
    %v63 = vld [vmem:[#allocation2] sm:$0xf]
    %v64 = vld [vmem:[#allocation5] sm:$0xff]
    %v65 = vld [vmem:[#allocation5 + $0x8] sm:$0xff]
    %v66 = vld [vmem:[#allocation5 + $0x10] sm:$0xff]
    %v67 = vld [vmem:[#allocation5 + $0x18] sm:$0xff]
    %v68 = vld [vmem:[#allocation5 + $0x20] sm:$0xff]
    %v69 = vld [vmem:[#allocation5 + $0x28] sm:$0xff]
    %v70 = vld [vmem:[#allocation5 + $0x30] sm:$0xff]
    %v71 = vld [vmem:[#allocation5 + $0x38] sm:$0xff]
    %v72 = vld [vmem:[#allocation5 + $0x40] sm:$0xff]
    %v73 = vld [vmem:[#allocation5 + $0x48] sm:$0xff]
    %v74 = vld [vmem:[#allocation5 + $0x50] sm:$0xff]
    %v75 = vld [vmem:[#allocation5 + $0x58] sm:$0xff]
    %v76 = vld [vmem:[#allocation5 + $0x60] sm:$0xff]
    %v77 = vld [vmem:[#allocation5 + $0x68] sm:$0xff]
    %v78 = vld [vmem:[#allocation5 + $0x70] sm:$0xff]
    %v79 = vld [vmem:[#allocation5 + $0x78] sm:$0xff]
    %v80 = vld [vmem:[#allocation5 + $0x80] sm:$0xff]
    %v81 = vld [vmem:[#allocation5 + $0x88] sm:$0xff]
    %v82 = vld [vmem:[#allocation5 + $0x90] sm:$0xff]
    %v83 = vld [vmem:[#allocation5 + $0x98] sm:$0xff]
    %v84 = vld [vmem:[#allocation5 + $0xa0] sm:$0xff]
    %v85 = vld [vmem:[#allocation5 + $0xa8] sm:$0xff]
    %v86 = vld [vmem:[#allocation5 + $0xb0] sm:$0xff]
    %v87 = vld [vmem:[#allocation5 + $0xb8] sm:$0xff]
    %v88 = vld [vmem:[#allocation5 + $0xc0] sm:$0xff]
    %v89 = vld [vmem:[#allocation5 + $0xc8] sm:$0xff]
    %v90 = vld [vmem:[#allocation5 + $0xd0] sm:$0xff]
    %v91 = vld [vmem:[#allocation5 + $0xd8] sm:$0xff]
    %v92 = vld [vmem:[#allocation5 + $0xe0] sm:$0xff]
    %v93 = vld [vmem:[#allocation5 + $0xe8] sm:$0xff]
    %v94 = vld [vmem:[#allocation5 + $0xf0] sm:$0xff]
    %v95 = vld [vmem:[#allocation5 + $0xf8] sm:$0xff]
    %v96 = vld [vmem:[%s2] sm:$0x1]
    %v98 = vperm.slane %v96, 0
    %101 = vst [vmem:[#allocation1] ss:$4 sm:$0xff] %v63
    %v102 = vld.sshfl [vmem:[#allocation1] sm:$0xff pattern:$0x73625140]
    %v103 = vld.sshfl [vmem:[#allocation1 + $0x8] sm:$0xff pattern:$0x73625140]
    %106 = vmatpush.msra.mxu0 %v79
    %107 = vmatpush.msra.mxu0 %v78
    %108 = vmatpush.msra.mxu0 %v77
    %109 = vmatpush.msra.mxu0 %v76
    %110 = vmatpush.msra.mxu0 %v75
    %111 = vmatpush.msra.mxu0 %v74
    %112 = vmatpush.msra.mxu0 %v73
    %113 = vmatpush.msra.mxu0 %v72
    %114 = vmatpush.msra.mxu0 %v71
    %115 = vmatpush.msra.mxu0 %v70
    %116 = vmatpush.msra.mxu0 %v69
    %117 = vmatpush.msra.mxu0 %v68
    %118 = vmatpush.msra.mxu0 %v67
    %119 = vmatpush.msra.mxu0 %v66
    %120 = vmatpush.msra.mxu0 %v65
    %121 = vmatpush.msra.mxu0 %v64
    %122 = vmatmul.f32.gmra.mxu0 %v102
    %v123 = vpop.f32.mrf.mxu0
    %v124 = vadd.f32 %v98, %v123
    %125 = vdwg.mxu0
    %126 = vmatpush.msra.mxu0 %v95
    %127 = vmatpush.msra.mxu0 %v94
    %128 = vmatpush.msra.mxu0 %v93
    %129 = vmatpush.msra.mxu0 %v92
    %130 = vmatpush.msra.mxu0 %v91
    %131 = vmatpush.msra.mxu0 %v90
    %132 = vmatpush.msra.mxu0 %v89
    %133 = vmatpush.msra.mxu0 %v88
    %134 = vmatpush.msra.mxu0 %v87
    %135 = vmatpush.msra.mxu0 %v86
    %136 = vmatpush.msra.mxu0 %v85
    %137 = vmatpush.msra.mxu0 %v84
    %138 = vmatpush.msra.mxu0 %v83
    %139 = vmatpush.msra.mxu0 %v82
    %140 = vmatpush.msra.mxu0 %v81
    %141 = vmatpush.msra.mxu0 %v80
    %142 = vmatmul.f32.gmra.mxu0 %v103
    %v143 = vpop.f32.mrf.mxu0
    %v144 = vadd.f32 %v124, %v143
    %145 = vdwg.mxu0
    %v146 = vtanh.pop %v144
    %v147 = vld [vmem:[#allocation7] sm:$0xff]
    %v148 = vld [vmem:[#allocation7 + $0x8] sm:$0xff]
    %v149 = vld [vmem:[#allocation7 + $0x10] sm:$0xff]
    %v150 = vld [vmem:[#allocation7 + $0x18] sm:$0xff]
    %v151 = vld [vmem:[#allocation7 + $0x20] sm:$0xff]
    %v152 = vld [vmem:[#allocation7 + $0x28] sm:$0xff]
    %v153 = vld [vmem:[#allocation7 + $0x30] sm:$0xff]
    %v154 = vld [vmem:[#allocation7 + $0x38] sm:$0xff]
    %v155 = vld [vmem:[#allocation7 + $0x40] sm:$0xff]
    %v156 = vld [vmem:[#allocation7 + $0x48] sm:$0xff]
    %v157 = vld [vmem:[#allocation7 + $0x50] sm:$0xff]
    %v158 = vld [vmem:[#allocation7 + $0x58] sm:$0xff]
    %v159 = vld [vmem:[#allocation7 + $0x60] sm:$0xff]
    %v160 = vld [vmem:[#allocation7 + $0x68] sm:$0xff]
    %v161 = vld [vmem:[#allocation7 + $0x70] sm:$0xff]
    %v162 = vld [vmem:[#allocation7 + $0x78] sm:$0xff]
    %v163 = vld [vmem:[#allocation7 + $0x80] sm:$0xff]
    %v164 = vld [vmem:[#allocation7 + $0x88] sm:$0xff]
    %v165 = vld [vmem:[#allocation7 + $0x90] sm:$0xff]
    %v166 = vld [vmem:[#allocation7 + $0x98] sm:$0xff]
    %v167 = vld [vmem:[#allocation7 + $0xa0] sm:$0xff]
    %v168 = vld [vmem:[#allocation7 + $0xa8] sm:$0xff]
    %v169 = vld [vmem:[#allocation7 + $0xb0] sm:$0xff]
    %v170 = vld [vmem:[#allocation7 + $0xb8] sm:$0xff]
    %v171 = vld [vmem:[#allocation7 + $0xc0] sm:$0xff]
    %v172 = vld [vmem:[#allocation7 + $0xc8] sm:$0xff]
    %v173 = vld [vmem:[#allocation7 + $0xd0] sm:$0xff]
    %v174 = vld [vmem:[#allocation7 + $0xd8] sm:$0xff]
    %v175 = vld [vmem:[#allocation7 + $0xe0] sm:$0xff]
    %v176 = vld [vmem:[#allocation7 + $0xe8] sm:$0xff]
    %v177 = vld [vmem:[#allocation7 + $0xf0] sm:$0xff]
    %v178 = vld [vmem:[#allocation7 + $0xf8] sm:$0xff]
    %179 = vmatpush.msra.mxu0 %v177
    %180 = vmatpush.msra.mxu0 %v175
    %181 = vmatpush.msra.mxu0 %v173
    %182 = vmatpush.msra.mxu0 %v171
    %183 = vmatpush.msra.mxu0 %v169
    %184 = vmatpush.msra.mxu0 %v167
    %185 = vmatpush.msra.mxu0 %v165
    %186 = vmatpush.msra.mxu0 %v163
    %187 = vmatpush.msra.mxu0 %v161
    %188 = vmatpush.msra.mxu0 %v159
    %189 = vmatpush.msra.mxu0 %v157
    %190 = vmatpush.msra.mxu0 %v155
    %191 = vmatpush.msra.mxu0 %v153
    %192 = vmatpush.msra.mxu0 %v151
    %193 = vmatpush.msra.mxu0 %v149
    %194 = vmatpush.msra.mxu0 %v147
    %195 = vmatmul.f32.gmra.mxu0 %v146
    %v196 = vpop.f32.mrf.mxu0
    %v197 = vadd.f32 0.0, %v196
    %198 = vdwg.mxu0
    %199 = vmatpush.msra.mxu0 %v178
    %200 = vmatpush.msra.mxu0 %v176
    %201 = vmatpush.msra.mxu0 %v174
    %202 = vmatpush.msra.mxu0 %v172
    %203 = vmatpush.msra.mxu0 %v170
    %204 = vmatpush.msra.mxu0 %v168
    %205 = vmatpush.msra.mxu0 %v166
    %206 = vmatpush.msra.mxu0 %v164
    %207 = vmatpush.msra.mxu0 %v162
    %208 = vmatpush.msra.mxu0 %v160
    %209 = vmatpush.msra.mxu0 %v158
    %210 = vmatpush.msra.mxu0 %v156
    %211 = vmatpush.msra.mxu0 %v154
    %212 = vmatpush.msra.mxu0 %v152
    %213 = vmatpush.msra.mxu0 %v150
    %214 = vmatpush.msra.mxu0 %v148
    %215 = vmatmul.f32.gmra.mxu0 %v146
    %v216 = vpop.f32.mrf.mxu0
    %v217 = vadd.f32 0.0, %v216
    %218 = vdwg.mxu0
    %vm219 = vcmask 1041408
    %v220 = vsel %vm219, %v197, -inf
    %v221 = vsel %vm219, %v217, -inf
    %v222 = vmax.f32 %v220, %v221
    %223 = vmax.xlane.f32.xlu0 %v222
    %v224 = vpop.xlane.xlu0 %223
    %v225 = vsub.f32 %v197, %v224
    %v226 = vsub.f32 %v217, %v224
    %v227 = vmul.f32 %v225, 1.442695
    %v228 = vpow.pop %v227
    %v229 = vmul.f32 %v226, 1.442695
    %v230 = vpow.pop %v229
    %v231 = vsel %vm219, %v228, 0.0
    %v232 = vsel %vm219, %v230, 0.0
    %v233 = vadd.f32 %v231, %v232
    %234 = vadd.xlane.f32.xlu0 %v233
    %v235 = vpop.xlane.xlu0 %234
    %236 = vst [vmem:[#allocation1] ss:$4 sm:$0xff] %v63
    %v237 = vld.sshfl [vmem:[#allocation1] sm:$0xff pattern:$0x73625140]
    %v238 = vld.sshfl [vmem:[#allocation1 + $0x8] sm:$0xff pattern:$0x73625140]
    %v241 = vmul.f32 %v228, %v237
    %v242 = vmul.f32 %v230, %v238
    %v243 = vadd.f32 %v241, %v242
    %245 = vrot.lane.b32.xlu0 %v243, 64
    %v246 = vpop.permute.xlu0 %245
    %v248 = vadd.f32 %v243, %v246
    %250 = vrot.lane.b32.xlu0 %v248, 96
    %v251 = vpop.permute.xlu0 %250
    %v253 = vadd.f32 %v248, %v251
    %v254 = vrcp.pop %v235
    %v255 = vmul.f32 %v235, %v254
    %v256 = vsub.f32 1.0, %v255
    %v257 = vmul.f32 %v254, %v256
    %v258 = vadd.f32 %v254, %v257
    %vm259 = vweird.f32 %v235
    %vm260 = vweird.f32 %v254
    %vm261 = vmor %vm259, %vm260
    %v262 = vsel %vm261, %v254, %v258
    %v263 = vand.u32 2147483647, %v235
    %vm264 = vcmp.eq.f32.partialorder %v263, 8.507059e+37
    %v265 = vand.u32 %v235, 2147483648
    %v266 = vor.u32 1.1754944e-38, %v265
    %v267 = vsel %vm264, %v266, %v262
    %v268 = vmul.f32 %v267, 32.0
    %v269 = vmul.f32 %v253, %v268
    %vm270 = vcmask 254976
    %271 = vst.msk [vmem:[#allocation8] sm:$0x3] %vm270, %v269
    // Predicated region
    $region30: #{tpu_custom_call.1} parent=1 // pred_check
      _
    $region31: #{tpu_custom_call.1} parent=1 // pred_check_branch
      %273 = sbr.rel (0) target = $region33
    $region32: #{tpu_custom_call.1} parent=1 // pred_region
      %275 = vsyncadd [#allocation4], 0
      %s277 = sshll.u32 [#allocation8], 4
      %s278 = int_to_ptr.vmem [resolvable:$true] %s277
      %s279 = sshll.u32 %s4, 4
      %s280 = int_to_ptr.hbm [resolvable:$true] %s279
      %282 = dma.vmem_to_hbm [thread:$0]  %s278, 32, %s280, [#allocation4]
    $region33: #{tpu_custom_call.1} parent=1 // pred_fallthru
      _
    // Predicated region
    $region34: #{tpu_custom_call.1} parent=1 // pred_check
      _
    $region35: #{tpu_custom_call.1} parent=1 // pred_check_branch
      %284 = sbr.rel (0) target = $region37
    $region36: #{tpu_custom_call.1} parent=1 // pred_region
      %286 = dma.done [#allocation4], 32
    $region37: #{tpu_custom_call.1} parent=1 // pred_fallthru
      _
    %287 = vsyncpa [#allocation3], 1
    %288 = vsyncpa [#allocation6], 1
    %289 = vsyncpa [#allocation4], 1

</llo_original>
